<compile_context>
chip_gen: v5e
topology: v5e:2x2
jax: 0.10.0
libtpu: 0.0.40
codegen_flags: <defaults>
</compile_context>

<pallas_src>
import functools

import jax
import jax.numpy as jnp
from jax import lax
from jax.experimental import pallas as pl
from jax.experimental.pallas import tpu as pltpu


_MASK_VALUE = -1e30  # finite "minus infinity" so masked exp() underflows to 0 exactly


# ---------------------------------------------------------------------------
# One-time hardware / feature probes
# ---------------------------------------------------------------------------
@functools.lru_cache(maxsize=1)
def _vmem_capacity_bytes():
    try:
        return int(pltpu.get_tpu_info().vmem_capacity_bytes)
    except Exception:
        return 128 * 1024 * 1024  # v5e/v6e default


@functools.lru_cache(maxsize=1)
def _single_buffer_supported():
    """Probe pl.Buffered(1) once on a tiny kernel (narrow feature check only)."""
    def _probe(x_ref, w_ref, o_ref):
        o_ref[...] = x_ref[...] + w_ref[...]

    try:
        spec_db = pl.BlockSpec((8, 128), lambda i: (0, 0))
        spec_sb = pl.BlockSpec((8, 128), lambda i: (0, 0),
                               pipeline_mode=pl.Buffered(1))
        x = jnp.zeros((8, 128), jnp.float32)
        out = pl.pallas_call(
            _probe,
            out_shape=jax.ShapeDtypeStruct((8, 128), jnp.float32),
            grid=(1,),
            in_specs=[spec_db, spec_sb],
            out_specs=spec_db,
        )(x, x)
        jax.block_until_ready(out)
        return True
    except Exception:
        return False


def _const_spec(shape, index_map):
    """BlockSpec for a grid-invariant operand: single-buffered when supported
    (constant index_map => double buffering buys nothing, only VMEM)."""
    if _single_buffer_supported():
        return pl.BlockSpec(shape, index_map, pipeline_mode=pl.Buffered(1))
    return pl.BlockSpec(shape, index_map)


# ---------------------------------------------------------------------------
# Pass 1: fused K|V projection:  kv = states @ [Wk|Wv] + [bk|bv]   (bf16 out)
# ---------------------------------------------------------------------------
def _kv_proj_kernel(s_ref, wkv_ref, bkv_ref, kv_ref):
    # s_ref: (1, tk, D) bf16; wkv_ref: (D, 2D) bf16; bkv_ref: (1, 2D) f32
    kv = jnp.dot(s_ref[0], wkv_ref[...],
                 preferred_element_type=jnp.float32) + bkv_ref[...]
    kv_ref[0] = kv.astype(kv_ref.dtype)


# ---------------------------------------------------------------------------
# Pass 2: Q projection + online-softmax attention + out-proj + residual + LN
# ---------------------------------------------------------------------------
def _attn_ln_kernel(x_ref, kv_ref, wq_ref, wo_ref, bq_ref, bo_ref,
                    gamma_ref, beta_ref, o_ref,
                    q_scr, m_scr, l_scr, acc_scr,
                    *, n_heads, seq_k, mask_kv):
    ki = pl.program_id(2)
    n_kt = pl.num_programs(2)
    tq, D = q_scr.shape
    tk = kv_ref.shape[1]
    dh = D // n_heads

    # ---- first Tk step: Q projection (scale pre-folded) + softmax-state init ----
    @pl.when(ki == 0)
    def _():
        q = jnp.dot(x_ref[0].astype(jnp.bfloat16), wq_ref[...],
                    preferred_element_type=jnp.float32) + bq_ref[...]
        q_scr[...] = q.astype(jnp.bfloat16)
        m_scr[...] = jnp.full_like(m_scr, -jnp.inf)
        l_scr[...] = jnp.zeros_like(l_scr)
        acc_scr[...] = jnp.zeros_like(acc_scr)

    # ---- online softmax over this Tk tile, per head (operands sliced from refs) --
    for h in range(n_heads):  # static unroll over heads
        lo = h * dh
        qh = q_scr[:, lo:lo + dh]                       # (tq, dh) bf16
        kh = kv_ref[0, :, lo:lo + dh]                   # (tk, dh) bf16
        vh = kv_ref[0, :, D + lo:D + lo + dh]           # (tk, dh) bf16

        # scores = qh @ kh^T via contraction on dim 1 (no XLU transpose)
        s = lax.dot_general(qh, kh, (((1,), (1,)), ((), ())),
                            preferred_element_type=jnp.float32)      # (tq, tk)
        if mask_kv:
            col = lax.broadcasted_iota(jnp.int32, (tq, tk), 1)
            s = jnp.where(col < (seq_k - ki * tk), s, _MASK_VALUE)

        m_prev = m_scr[h]                               # (tq, 1)
        l_prev = l_scr[h]                               # (tq, 1)
        m_new = jnp.maximum(m_prev, jnp.max(s, axis=-1, keepdims=True))
        alpha = jnp.exp(m_prev - m_new)                 # (tq, 1)
        p = jnp.exp(s - m_new)                          # un-normalized probabilities
        l_scr[h] = alpha * l_prev + jnp.sum(p, axis=-1, keepdims=True)
        m_scr[h] = m_new
        pv = jnp.dot(p.astype(jnp.bfloat16), vh,
                     preferred_element_type=jnp.float32)              # (tq, dh)
        acc_scr[:, lo:lo + dh] = alpha * acc_scr[:, lo:lo + dh] + pv

    # ---- last Tk step: normalize after PV, ONE D-deep out-proj, residual, LN ----
    @pl.when(ki == n_kt - 1)
    def _():
        # Normalize the (tq, dh) context per head (not the (tq, Tk) probabilities).
        for h in range(n_heads):
            lo = h * dh
            inv_l = pl.reciprocal(l_scr[h], approx=True)              # (tq, 1)
            acc_scr[:, lo:lo + dh] = acc_scr[:, lo:lo + dh] * inv_l
        ctx = acc_scr[...].astype(jnp.bfloat16)                       # (tq, D)
        # Single full-depth output projection (heads already concatenated in lanes).
        attn = jnp.dot(ctx, wo_ref[...],
                       preferred_element_type=jnp.float32) + bo_ref[...]
        # dropout: identity (eval mode)
        y = x_ref[0] + attn                                           # residual (f32)
        # One-pass LayerNorm statistics: var = E[y^2] - mean^2.
        mean = jnp.mean(y, axis=-1, keepdims=True)
        var = jnp.mean(y * y, axis=-1, keepdims=True) - mean * mean
        norm = (y - mean) * lax.rsqrt(var + 1e-5)
        o_ref[0] = (norm * gamma_ref[...] + beta_ref[...]).astype(o_ref.dtype)


# ---------------------------------------------------------------------------
# Wrapper
# ---------------------------------------------------------------------------
def attention_sublayer(x, states, params, *, n_heads,
                       tq_block=None, tk_block=512, kv_proj_block=512):
    B, Tq, D = x.shape
    Tk = states.shape[1]
    assert D % n_heads == 0, "n_heads must divide the model dimension"
    wq, wk, wv, wo, bq, bk, bv, bo, gamma, beta = params
    dh = D // n_heads
    scale = 1.0 / (dh ** 0.5)

    # Generation-aware VMEM budget and Tq tile (64 MiB on v7x, 128 MiB v5e/v6e).
    vmem_cap = _vmem_capacity_bytes()
    vmem_limit = min((vmem_cap * 3) // 4, 100 * 1024 * 1024)
    if tq_block is None:
        tq_block = 512 if vmem_cap >= 96 * 1024 * 1024 else 256

    # Fold the attention scale into the Q projection; bf16 weight storage for MXU.
    wq_s = (wq * scale).astype(jnp.bfloat16)                        # (D, D)
    bq_s = (bq * scale).astype(jnp.float32)                         # (1, D)
    wkv = jnp.concatenate([wk, wv], axis=-1).astype(jnp.bfloat16)   # (D, 2D)
    bkv = jnp.concatenate([bk, bv], axis=-1).astype(jnp.float32)    # (1, 2D)
    wo_b = wo.astype(jnp.bfloat16)                                  # (D, D)
    states_b = states.astype(jnp.bfloat16)   # halve activation HBM reads in pass 1

    # -------- pass 1: fused K/V projection, once per (batch, Tk-tile) --------
    tkp = min(kv_proj_block, Tk)
    kv = pl.pallas_call(
        _kv_proj_kernel,
        out_shape=jax.ShapeDtypeStruct((B, Tk, 2 * D), jnp.bfloat16),
        grid=(B, pl.cdiv(Tk, tkp)),
        in_specs=[
            pl.BlockSpec((1, tkp, D), lambda b, t: (b, t, 0)),
            _const_spec((D, 2 * D), lambda b, t: (0, 0)),
            _const_spec((1, 2 * D), lambda b, t: (0, 0)),
        ],
        out_specs=pl.BlockSpec((1, tkp, 2 * D), lambda b, t: (b, t, 0)),
        compiler_params=pltpu.CompilerParams(
            dimension_semantics=("parallel", "parallel"),
            vmem_limit_bytes=vmem_limit),
    )(states_b, wkv, bkv)

    # -------- pass 2: flash-style attention + out-proj + residual + LayerNorm ----
    tq = min(tq_block, Tq)
    tk = min(tk_block, Tk)
    n_qt = pl.cdiv(Tq, tq)
    n_kt = pl.cdiv(Tk, tk)
    mask_kv = (Tk % tk) != 0
    if mask_kv:
        # Zero-pad kv so partial Tk tiles never read unspecified VMEM contents;
        # padded columns are additionally masked to a large negative score.
        kv = jnp.pad(kv, ((0, 0), (0, n_kt * tk - Tk), (0, 0)))

    kernel = functools.partial(_attn_ln_kernel, n_heads=n_heads,
                               seq_k=Tk, mask_kv=mask_kv)

    return pl.pallas_call(
        kernel,
        out_shape=jax.ShapeDtypeStruct((B, Tq, D), jnp.float32),
        grid=(B, n_qt, n_kt),
        in_specs=[
            pl.BlockSpec((1, tq, D), lambda b, q, k: (b, q, 0)),        # x tile
            pl.BlockSpec((1, tk, 2 * D), lambda b, q, k: (b, k, 0)),    # kv tile
            _const_spec((D, D), lambda b, q, k: (0, 0)),                # wq (scaled)
            _const_spec((D, D), lambda b, q, k: (0, 0)),                # wo
            _const_spec((1, D), lambda b, q, k: (0, 0)),                # bq (scaled)
            _const_spec((1, D), lambda b, q, k: (0, 0)),                # bo
            _const_spec((1, D), lambda b, q, k: (0, 0)),                # gamma
            _const_spec((1, D), lambda b, q, k: (0, 0)),                # beta
        ],
        out_specs=pl.BlockSpec((1, tq, D), lambda b, q, k: (b, q, 0)),
        scratch_shapes=[
            pltpu.VMEM((tq, D), jnp.bfloat16),           # q (resident over Tk axis)
            pltpu.VMEM((n_heads, tq, 1), jnp.float32),   # running max per head
            pltpu.VMEM((n_heads, tq, 1), jnp.float32),   # running sum per head
            pltpu.VMEM((tq, D), jnp.float32),            # context accumulator
        ],
        compiler_params=pltpu.CompilerParams(
            dimension_semantics=("parallel", "parallel", "arbitrary"),
            vmem_limit_bytes=vmem_limit),
    )(x, kv, wq_s, wo_b, bq_s, bo, gamma, beta)


# ---------------------------------------------------------------------------
# Pure-JAX f32 reference (PyTorch semantics) for correctness checking
# ---------------------------------------------------------------------------
def _reference(x, states, params, *, n_heads):
    wq, wk, wv, wo, bq, bk, bv, bo, gamma, beta = params
    B, Tq, D = x.shape
    Tk = states.shape[1]
    dh = D // n_heads
    q = x @ wq + bq
    k = states @ wk + bk
    v = states @ wv + bv
    q = q.reshape(B, Tq, n_heads, dh).transpose(0, 2, 1, 3)
    k = k.reshape(B, Tk, n_heads, dh).transpose(0, 2, 1, 3)
    v = v.reshape(B, Tk, n_heads, dh).transpose(0, 2, 1, 3)
    scores = jnp.einsum("bhqd,bhkd->bhqk", q, k) / (dh ** 0.5)
    p = jax.nn.softmax(scores, axis=-1)
    ctx = jnp.einsum("bhqk,bhkd->bhqd", p, v).transpose(0, 2, 1, 3).reshape(B, Tq, D)
    attn_out = ctx @ wo + bo
    y = x + attn_out
    mean = jnp.mean(y, axis=-1, keepdims=True)
    var = jnp.mean((y - mean) ** 2, axis=-1, keepdims=True)
    return (y - mean) * lax.rsqrt(var + 1e-5) * gamma[0] + beta[0]


if __name__ == "__main__":
    def _run_case(key, B, Tq, Tk, D, H, **kw):
        keys = jax.random.split(key, 12)
        x = jax.random.normal(keys[0], (B, Tq, D), dtype=jnp.float32)
        states = jax.random.normal(keys[1], (B, Tk, D), dtype=jnp.float32)

        def w_init(k):
            return jax.random.normal(k, (D, D), dtype=jnp.float32) * (1.0 / D ** 0.5)

        wq, wk, wv, wo = (w_init(k) for k in keys[2:6])
        bq, bk, bv, bo = (jax.random.normal(k, (1, D), dtype=jnp.float32) * 0.02
                          for k in keys[6:10])
        gamma = jnp.ones((1, D), dtype=jnp.float32)
        beta = jnp.zeros((1, D), dtype=jnp.float32)
        params = (wq, wk, wv, wo, bq, bk, bv, bo, gamma, beta)

        out = attention_sublayer(x, states, params, n_heads=H, **kw)
        out = jax.block_until_ready(out)
        ref = _reference(x, states, params, n_heads=H)

        assert out.shape == (B, Tq, D)
        max_err = float(jnp.max(jnp.abs(out - ref)))
        mean_err = float(jnp.mean(jnp.abs(out - ref)))
        # bf16 matmul operands + approx reciprocal => loosened tolerance vs f32 ref.
        assert max_err < 8e-2 and mean_err < 1e-2, \
            f"B={B} Tq={Tq} Tk={Tk} D={D} H={H}: max err {max_err}, mean err {mean_err}"

    root = jax.random.PRNGKey(0)
    k_small, k_big, k_mask = jax.random.split(root, 3)
    # Small shape (matches the module's nominal small config).
    _run_case(k_small, B=2, Tq=8, Tk=8, D=32, H=4)
    # Lane-aligned shape (D multiple of 128) to exercise realistic layouts.
    _run_case(k_big, B=2, Tq=128, Tk=128, D=128, H=4)
    # Tk not divisible by the Tk tile -> exercises kv padding + score masking path.
    _run_case(k_mask, B=1, Tq=16, Tk=80, D=128, H=4, tk_block=64)

    print("KERNEL_OK")
</pallas_src>

<mosaic_0001>
module attributes {stable_mosaic.version = 11 : i64} {
  func.func @_probe(%arg0: i32, %arg1: memref<8x128xf32, #tpu.memory_space<vmem>>, %arg2: memref<8x128xf32, #tpu.memory_space<vmem>>, %arg3: memref<8x128xf32, #tpu.memory_space<vmem>>) attributes {dimension_semantics = [#tpu.dimension_semantics<arbitrary>], iteration_bounds = array<i64: 1>, scalar_prefetch = 0 : i64, scratch_operands = 0 : i64, tpu.core_type = #tpu.core_type<tc>, window_params = [{pipeline_mode = #tpu.pipeline_mode<synchronous>, transform_indices = @transform_0, window_bounds = array<i64: 8, 128>}, {pipeline_mode = #tpu.pipeline_mode<synchronous>, transform_indices = @transform_1, window_bounds = array<i64: 8, 128>}, {pipeline_mode = #tpu.pipeline_mode<synchronous>, transform_indices = @transform_2, window_bounds = array<i64: 8, 128>}]} {
    %c0 = arith.constant 0 : index
    %c0_0 = arith.constant 0 : index
    %0 = vector.load %arg1[%c0, %c0_0] : memref<8x128xf32, #tpu.memory_space<vmem>>, vector<8x128xf32>
    %c0_1 = arith.constant 0 : index
    %c0_2 = arith.constant 0 : index
    %1 = vector.load %arg2[%c0_1, %c0_2] : memref<8x128xf32, #tpu.memory_space<vmem>>, vector<8x128xf32>
    %2 = arith.addf %0, %1 : vector<8x128xf32>
    %c0_3 = arith.constant 0 : index
    %c0_4 = arith.constant 0 : index
    %3 = vector.load %arg3[%c0_3, %c0_4] : memref<8x128xf32, #tpu.memory_space<vmem>>, vector<8x128xf32>
    tpu.vector_store %arg3[%c0_3, %c0_4], %2 {strides = array<i32>} : memref<8x128xf32, #tpu.memory_space<vmem>>, vector<8x128xf32>,
    return
  }
  func.func @transform_0(%arg0: i32) -> (i32, i32) {
    %c0_i32 = arith.constant 0 : i32
    %c0_i32_0 = arith.constant 0 : i32
    %c0_i32_1 = arith.constant 0 : i32
    return %c0_i32, %c0_i32_0 : i32, i32
  }
  func.func @transform_1(%arg0: i32) -> (i32, i32) {
    %c0_i32 = arith.constant 0 : i32
    %c0_i32_0 = arith.constant 0 : i32
    %c0_i32_1 = arith.constant 0 : i32
    return %c0_i32, %c0_i32_0 : i32, i32
  }
  func.func @transform_2(%arg0: i32) -> (i32, i32) {
    %c0_i32 = arith.constant 0 : i32
    %c0_i32_0 = arith.constant 0 : i32
    %c0_i32_1 = arith.constant 0 : i32
    return %c0_i32, %c0_i32_0 : i32, i32
  }
}

module attributes {stable_mosaic.version = 11 : i64} {
  func.func @_kv_proj_kernel(%arg0: i32, %arg1: i32, %arg2: memref<1x8x32xbf16, #tpu.memory_space<vmem>>, %arg3: memref<32x64xbf16, #tpu.memory_space<vmem>>, %arg4: memref<1x64xf32, #tpu.memory_space<vmem>>, %arg5: memref<1x8x64xbf16, #tpu.memory_space<vmem>>) attributes {dimension_semantics = [#tpu.dimension_semantics<parallel>, #tpu.dimension_semantics<parallel>], iteration_bounds = array<i64: 2, 1>, scalar_prefetch = 0 : i64, scratch_operands = 0 : i64, tpu.core_type = #tpu.core_type<tc>, window_params = [{transform_indices = @transform_0, window_bounds = array<i64: 1, 8, 32>}, {pipeline_mode = #tpu.pipeline_mode<synchronous>, transform_indices = @transform_1, window_bounds = array<i64: 32, 64>}, {pipeline_mode = #tpu.pipeline_mode<synchronous>, transform_indices = @transform_2, window_bounds = array<i64: 1, 64>}, {transform_indices = @transform_3, window_bounds = array<i64: 1, 8, 64>}]} {
    %c0 = arith.constant 0 : index
    %c0_0 = arith.constant 0 : index
    %c0_1 = arith.constant 0 : index
    %0 = vector.load %arg2[%c0, %c0_0, %c0_1] : memref<1x8x32xbf16, #tpu.memory_space<vmem>>, vector<1x8x32xbf16>
    %1 = vector.shape_cast %0 : vector<1x8x32xbf16> to vector<8x32xbf16>
    %c0_2 = arith.constant 0 : index
    %c0_3 = arith.constant 0 : index
    %2 = vector.load %arg3[%c0_2, %c0_3] : memref<32x64xbf16, #tpu.memory_space<vmem>>, vector<32x64xbf16>
    %cst = arith.constant dense<0.000000e+00> : vector<8x64xf32>
    %3 = tpu.matmul %1, %2, %cst {dimension_numbers = #tpu.dot_dimension_numbers<[1], [0], [0], [1], [0, 0, 1, 1], [], []>} : vector<8x32xbf16>, vector<32x64xbf16>, vector<8x64xf32> -> vector<8x64xf32>
    %c0_4 = arith.constant 0 : index
    %c0_5 = arith.constant 0 : index
    %4 = vector.load %arg4[%c0_4, %c0_5] : memref<1x64xf32, #tpu.memory_space<vmem>>, vector<1x64xf32>
    %5 = vector.broadcast %4 : vector<1x64xf32> to vector<8x64xf32>
    %6 = arith.addf %3, %5 : vector<8x64xf32>
    %7 = arith.truncf %6 : vector<8x64xf32> to vector<8x64xbf16>
    %c0_6 = arith.constant 0 : index
    %c0_7 = arith.constant 0 : index
    %c0_8 = arith.constant 0 : index
    %8 = vector.load %arg5[%c0_6, %c0_7, %c0_8] : memref<1x8x64xbf16, #tpu.memory_space<vmem>>, vector<1x8x64xbf16>
    %9 = vector.shape_cast %8 : vector<1x8x64xbf16> to vector<8x64xbf16>
    %10 = vector.shape_cast %7 : vector<8x64xbf16> to vector<1x8x64xbf16>
    tpu.vector_store %arg5[%c0_6, %c0_7, %c0_8], %10 {strides = array<i32>} : memref<1x8x64xbf16, #tpu.memory_space<vmem>>, vector<1x8x64xbf16>,
    return
  }
  func.func @transform_0(%arg0: i32, %arg1: i32) -> (i32, i32, i32) {
    %c0_i32 = arith.constant 0 : i32
    %c0_i32_0 = arith.constant 0 : i32
    return %arg0, %arg1, %c0_i32 : i32, i32, i32
  }
  func.func @transform_1(%arg0: i32, %arg1: i32) -> (i32, i32) {
    %c0_i32 = arith.constant 0 : i32
    %c0_i32_0 = arith.constant 0 : i32
    %c0_i32_1 = arith.constant 0 : i32
    return %c0_i32, %c0_i32_0 : i32, i32
  }
  func.func @transform_2(%arg0: i32, %arg1: i32) -> (i32, i32) {
    %c0_i32 = arith.constant 0 : i32
    %c0_i32_0 = arith.constant 0 : i32
    %c0_i32_1 = arith.constant 0 : i32
    return %c0_i32, %c0_i32_0 : i32, i32
  }
  func.func @transform_3(%arg0: i32, %arg1: i32) -> (i32, i32, i32) {
    %c0_i32 = arith.constant 0 : i32
    %c0_i32_0 = arith.constant 0 : i32
    return %arg0, %arg1, %c0_i32 : i32, i32, i32
  }
}

</mosaic_0001>

<llo_original>
// kernel: tpu_custom_call.1
$region0: #{tpu_custom_call.1}
  #allocation0 [shape = 'u32[]', space=smem, size = 0x4, offset = 0x4, fixed_abs, tag = 'smem constant byte address 0x4 - core index']
  #allocation1 [shape = 'u32[72,128]{1,0:T(1,128)}', space=vmem, size = 0x9000, scoped, tag = 'internal scratch']
  %s0 = inlined_call_operand.hbm [shape: f32[8,128], index: 0, kind: input, shape index: {}]
  %s1 = inlined_call_operand.hbm [shape: f32[8,128], index: 1, kind: input, shape index: {}]
  %s2 = inlined_call_operand.hbm [shape: f32[8,128], index: 2, kind: output, shape index: {}]
  %s3 = sld [smem:[#allocation0]]
  $region26: #{tpu_custom_call.1} parent=0
    _
  %s5 = ssub.s32 1, %s3
  %s6 = scalar_select 0, %s5, %s3
  $region1: #{tpu_custom_call.1} parent=0
    #allocation2 [shape = 'u8[4096]{0}', space=vmem, size = 0x1000, scoped, tag = 'input window, operand 0, single buffered']
    #allocation3 [shape = 's32[1]{0}', space=sflag, size = 0x4, scoped, tag = 'scoped memory for tpu_custom_call.1']
    #allocation4 [shape = 's32[1]{0}', space=sflag, size = 0x4, scoped, tag = 'scoped memory for tpu_custom_call.1']
    #allocation5 [shape = 'u8[4096]{0}', space=vmem, size = 0x1000, scoped, tag = 'input window, operand 1, single buffered']
    #allocation6 [shape = 's32[1]{0}', space=sflag, size = 0x4, scoped, tag = 'scoped memory for tpu_custom_call.1']
    #allocation7 [shape = 'u8[4096]{0}', space=vmem, size = 0x1000, scoped, tag = 'output window, operand 0, single buffered']
    %7 = vsyncpa [#allocation3], 0
    %8 = vsyncpa [#allocation6], 0
    %9 = vsyncpa [#allocation4], 0
    // Predicated region
    $region2: #{tpu_custom_call.1} parent=1 // pred_check
      _
    $region3: #{tpu_custom_call.1} parent=1 // pred_check_branch
      %11 = sbr.rel (0) target = $region5
    $region4: #{tpu_custom_call.1} parent=1 // pred_region
      %13 = vsyncadd [#allocation3], 0
      %s15 = sshll.u32 %s0, 4
      %s16 = int_to_ptr.hbm [resolvable:$true] %s15
      %s17 = sshll.u32 [#allocation2], 4
      %s18 = int_to_ptr.vmem [resolvable:$true] %s17
      %20 = dma.hbm_to_vmem [thread:$0]  %s16, 128, %s18, [#allocation3]
    $region5: #{tpu_custom_call.1} parent=1 // pred_fallthru
      _
    // Predicated region
    $region6: #{tpu_custom_call.1} parent=1 // pred_check
      _
    $region7: #{tpu_custom_call.1} parent=1 // pred_check_branch
      %22 = sbr.rel (0) target = $region9
    $region8: #{tpu_custom_call.1} parent=1 // pred_region
      %24 = vsyncadd [#allocation6], 0
      %s26 = sshll.u32 %s1, 4
      %s27 = int_to_ptr.hbm [resolvable:$true] %s26
      %s28 = sshll.u32 [#allocation5], 4
      %s29 = int_to_ptr.vmem [resolvable:$true] %s28
      %31 = dma.hbm_to_vmem [thread:$0]  %s27, 128, %s29, [#allocation6]
    $region9: #{tpu_custom_call.1} parent=1 // pred_fallthru
      _
    // Predicated region
    $region10: #{tpu_custom_call.1} parent=1 // pred_check
      _
    $region11: #{tpu_custom_call.1} parent=1 // pred_check_branch
      %33 = sbr.rel (0) target = $region13
    $region12: #{tpu_custom_call.1} parent=1 // pred_region
      %35 = dma.done [#allocation3], 128
    $region13: #{tpu_custom_call.1} parent=1 // pred_fallthru
      _
    // Predicated region
    $region14: #{tpu_custom_call.1} parent=1 // pred_check
      _
    $region15: #{tpu_custom_call.1} parent=1 // pred_check_branch
      %37 = sbr.rel (0) target = $region17
    $region16: #{tpu_custom_call.1} parent=1 // pred_region
      %39 = dma.done [#allocation6], 128
    $region17: #{tpu_custom_call.1} parent=1 // pred_fallthru
      _
    %v40 = vld [vmem:[#allocation2] sm:$0xff]
    %v41 = vld [vmem:[#allocation5] sm:$0xff]
    %v42 = vadd.f32 %v40, %v41
    %43 = vst [vmem:[#allocation7] sm:$0xff] %v42
    // Predicated region
    $region18: #{tpu_custom_call.1} parent=1 // pred_check
      _
    $region19: #{tpu_custom_call.1} parent=1 // pred_check_branch
      %45 = sbr.rel (0) target = $region21
    $region20: #{tpu_custom_call.1} parent=1 // pred_region
      %47 = vsyncadd [#allocation4], 0
      %s49 = sshll.u32 [#allocation7], 4
      %s50 = int_to_ptr.vmem [resolvable:$true] %s49
      %s51 = sshll.u32 %s2, 4
      %s52 = int_to_ptr.hbm [resolvable:$true] %s51
      %54 = dma.vmem_to_hbm [thread:$0]  %s50, 128, %s52, [#allocation4]
    $region21: #{tpu_custom_call.1} parent=1 // pred_fallthru
      _
    // Predicated region
    $region22: #{tpu_custom_call.1} parent=1 // pred_check
      _
    $region23: #{tpu_custom_call.1} parent=1 // pred_check_branch
      %56 = sbr.rel (0) target = $region25
    $region24: #{tpu_custom_call.1} parent=1 // pred_region
      %58 = dma.done [#allocation4], 128
    $region25: #{tpu_custom_call.1} parent=1 // pred_fallthru
      _
    %59 = vsyncpa [#allocation3], 1
    %60 = vsyncpa [#allocation6], 1
    %61 = vsyncpa [#allocation4], 1

// kernel: tpu_custom_call.1
$region0: #{tpu_custom_call.1}
  #allocation0 [shape = 'u32[]', space=smem, size = 0x4, offset = 0x4, fixed_abs, tag = 'smem constant byte address 0x4 - core index']
  #allocation1 [shape = 'u32[72,128]{1,0:T(1,128)}', space=vmem, size = 0x9000, scoped, tag = 'internal scratch']
  %s0 = inlined_call_operand.hbm [shape: bf16[2,8,32], index: 0, kind: input, shape index: {}]
  %s1 = inlined_call_operand.hbm [shape: bf16[32,64], index: 1, kind: input, shape index: {}]
  %s2 = inlined_call_operand.vmem [shape: f32[1,64], index: 2, kind: input, shape index: {}]
  %s3 = inlined_call_operand.hbm [shape: bf16[2,8,64], index: 3, kind: output, shape index: {}]
  %s4 = sld [smem:[#allocation0]]
  $region53: #{tpu_custom_call.1} parent=0
    _
  %s6 = ssub.s32 1, %s4
  %s7 = scalar_select 0, %s6, %s4
  $region1: #{tpu_custom_call.1} parent=0
    #allocation2 [shape = 'u8[4096]{0}', space=vmem, size = 0x1000, scoped, tag = 'input window, operand 0']
    #allocation3 [shape = 's32[2]{0}', space=sflag, size = 0x8, scoped, tag = 'scoped memory for tpu_custom_call.1']
    #allocation4 [shape = 's32[2]{0}', space=sflag, size = 0x8, scoped, tag = 'scoped memory for tpu_custom_call.1']
    #allocation5 [shape = 'u8[8192]{0}', space=vmem, size = 0x2000, scoped, tag = 'input window, operand 1, single buffered']
    #allocation6 [shape = 's32[1]{0}', space=sflag, size = 0x4, scoped, tag = 'scoped memory for tpu_custom_call.1']
    #allocation7 [shape = 'u8[4096]{0}', space=vmem, size = 0x1000, scoped, tag = 'output window, operand 0']
    %8 = vsyncpa [#allocation3], 0
    %s9 = scalar_lea.sflag [#allocation3], 1
    %10 = vsyncpa %s9, 0
    %11 = vsyncpa [#allocation6], 0
    %12 = vsyncpa [#allocation4], 0
    %s13 = scalar_lea.sflag [#allocation4], 1
    %14 = vsyncpa %s13, 0
    loop: start=0, step=1, limit=4
    $region2: #{tpu_custom_call.1} parent=1 // loop_pre_header
      _
    $region3: #{tpu_custom_call.1} parent=1 // loop_header
      %s16 = sphi 0, %s20
      %p17 = scmp.ge.s32.totalorder %s16, 4
      %s23 = sphi 0, %s35
      %s24 = sphi 0, %s31
      %s25 = sphi 0, %s23
      %s26 = sphi 0, %s24
      %s27 = sphi 0, %s25
      %s28 = sphi 0, %s26
      %s40 = sphi 0, %s42
      %s43 = sphi 0, %s40
      %s44 = sphi 0, %s43
      %s60 = sphi 0, %s44
      %s64 = sphi 0, %s64
      %s66 = sphi 0, %s64
      %s67 = sphi 0, %s66
      %s81 = sphi 0, %s67
      %s85 = sphi 0, %s85
      %s87 = sphi 0, %s85
      %s88 = sphi 0, %s87
      %s102 = sphi 0, %s88
      %s110 = sphi 0, %s112
      %s113 = sphi 0, %s110
      %s114 = sphi 0, %s113
      %s130 = sphi 0, %s114
    $region4: #{tpu_custom_call.1} parent=1 // loop_header_branch
      %19 = sbr.rel (%p17) target = $region8
    $region5: #{tpu_custom_call.1} parent=1 // loop_body
      %s21 = ssub.s32 %s16, 1
      %s22 = ssub.s32 %s16, 2
      %s29 = sadd.s32 1, %s24
      %p30 = scmp.ge.s32.totalorder %s29, 1
      %s31 = scalar_select %p30, 0, %s29
      %s32 = sadd.s32 1, %s23
      %s33 = scalar_select %p30, %s32, %s23
      %p34 = scmp.ge.s32.totalorder %s33, 2
      %s35 = scalar_select %p34, 0, %s33
      %s36 = ssub.s32 %s23, %s35
      %s37 = ssub.s32 %s24, %s31
      %s38 = sor.u32 %s36, %s37
      %p39 = scmp.eq.s32.totalorder %s38, 0
      %s41 = sadd.s32 %s40, 1
      %s42 = scalar_select %p39, %s40, %s41
      %p45 = pneg %p39
      %p46 = scmp.eq.s32.totalorder %s16, 1
      %p47 = por %p45, %p46
      %p48 = scmp.ne.s32.totalorder %s40, %s43
      %p49 = scmp.eq.s32.totalorder %s16, 0
      %p50 = por %p48, %p49
      %p51 = scmp.ne.s32.totalorder %s40, %s43
      %p52 = scmp.eq.s32.totalorder %s21, 1
      %p53 = por %p51, %p52
      %p54 = scmp.ne.s32.totalorder %s43, %s44
      %p55 = scmp.eq.s32.totalorder %s21, 0
      %p56 = por %p54, %p55
      %p57 = scmp.ne.s32.totalorder %s43, %s44
      %p58 = scmp.eq.s32.totalorder %s22, 1
      %p59 = por %p57, %p58
      %p61 = scmp.ne.s32.totalorder %s44, %s60
      %p62 = scmp.eq.s32.totalorder %s22, 0
      %p63 = por %p61, %p62
      %s65 = sadd.s32 %s64, 1
      %p68 = scmp.eq.s32.totalorder %s16, 1
      %p69 = scmp.ne.s32.totalorder %s64, %s66
      %p70 = scmp.eq.s32.totalorder %s16, 0
      %p71 = por %p69, %p70
      %p72 = scmp.ne.s32.totalorder %s64, %s66
      %p73 = scmp.eq.s32.totalorder %s21, 1
      %p74 = por %p72, %p73
      %p75 = scmp.ne.s32.totalorder %s66, %s67
      %p76 = scmp.eq.s32.totalorder %s21, 0
      %p77 = por %p75, %p76
      %p78 = scmp.ne.s32.totalorder %s66, %s67
      %p79 = scmp.eq.s32.totalorder %s22, 1
      %p80 = por %p78, %p79
      %p82 = scmp.ne.s32.totalorder %s67, %s81
      %p83 = scmp.eq.s32.totalorder %s22, 0
      %p84 = por %p82, %p83
      %s86 = sadd.s32 %s85, 1
      %p89 = scmp.eq.s32.totalorder %s16, 1
      %p90 = scmp.ne.s32.totalorder %s85, %s87
      %p91 = scmp.eq.s32.totalorder %s16, 0
      %p92 = por %p90, %p91
      %p93 = scmp.ne.s32.totalorder %s85, %s87
      %p94 = scmp.eq.s32.totalorder %s21, 1
      %p95 = por %p93, %p94
      %p96 = scmp.ne.s32.totalorder %s87, %s88
      %p97 = scmp.eq.s32.totalorder %s21, 0
      %p98 = por %p96, %p97
      %p99 = scmp.ne.s32.totalorder %s87, %s88
      %p100 = scmp.eq.s32.totalorder %s22, 1
      %p101 = por %p99, %p100
      %p103 = scmp.ne.s32.totalorder %s88, %s102
      %p104 = scmp.eq.s32.totalorder %s22, 0
      %p105 = por %p103, %p104
      %s106 = ssub.s32 %s23, %s35
      %s107 = ssub.s32 %s24, %s31
      %s108 = sor.u32 %s106, %s107
      %p109 = scmp.eq.s32.totalorder %s108, 0
      %s111 = sadd.s32 %s110, 1
      %s112 = scalar_select %p109, %s110, %s111
      %p115 = pneg %p109
      %p116 = scmp.eq.s32.totalorder %s16, 1
      %p117 = por %p115, %p116
      %p118 = scmp.ne.s32.totalorder %s110, %s113
      %p119 = scmp.eq.s32.totalorder %s16, 0
      %p120 = por %p118, %p119
      %p121 = scmp.ne.s32.totalorder %s110, %s113
      %p122 = scmp.eq.s32.totalorder %s21, 1
      %p123 = por %p121, %p122
      %p124 = scmp.ne.s32.totalorder %s113, %s114
      %p125 = scmp.eq.s32.totalorder %s21, 0
      %p126 = por %p124, %p125
      %p127 = scmp.ne.s32.totalorder %s113, %s114
      %p128 = scmp.eq.s32.totalorder %s22, 1
      %p129 = por %p127, %p128
      %p131 = scmp.ne.s32.totalorder %s114, %s130
      %p132 = scmp.eq.s32.totalorder %s22, 0
      %p133 = por %p131, %p132
      %p134 = scmp.le.s32.totalorder 1, %s16
      %p135 = scmp.lt.s32.totalorder %s16, 3
      %p136 = pnand %p134, %p135
      %p137 = pneg %p136
      // Predicated region
      $region9: #{tpu_custom_call.1} parent=5 // pred_check
        _
      $region10: #{tpu_custom_call.1} parent=5 // pred_check_branch
        %139 = sbr.rel (%p136) target = $region12
      $region11: #{tpu_custom_call.1} parent=5 // pred_region
        %s140 = ssub.s32 %s16, 1
        // Predicated region
        $region13: #{tpu_custom_call.1} parent=11 // pred_check
          %p141 = pneg %p77
        $region14: #{tpu_custom_call.1} parent=11 // pred_check_branch
          %143 = sbr.rel (%p141) target = $region16
        $region15: #{tpu_custom_call.1} parent=11 // pred_region
          %145 = vsyncadd [#allocation6], 0
          %s146 = sshll.u32 %s1, 4
          %s147 = int_to_ptr.hbm [resolvable:$true] %s146
          %s148 = sshll.u32 [#allocation5], 4
          %s149 = int_to_ptr.vmem [resolvable:$true] %s148
          %154 = dma.hbm_to_vmem [thread:$0]  %s147, 256, %s149, [#allocation6], 64, 64, 4
        $region16: #{tpu_custom_call.1} parent=11 // pred_fallthru
          _
        // Predicated region
        $region17: #{tpu_custom_call.1} parent=11 // pred_check
          %p155 = pneg %p98
        $region18: #{tpu_custom_call.1} parent=11 // pred_check_branch
          %157 = sbr.rel (%p155) target = $region20
        $region19: #{tpu_custom_call.1} parent=11 // pred_region
          _
        $region20: #{tpu_custom_call.1} parent=11 // pred_fallthru
          _
      $region12: #{tpu_custom_call.1} parent=5 // pred_fallthru
        _
      %p158 = scmp.lt.s32.totalorder %s16, 2
      // Predicated region
      $region21: #{tpu_custom_call.1} parent=5 // pred_check
        %p159 = pneg %p158
      $region22: #{tpu_custom_call.1} parent=5 // pred_check_branch
        %161 = sbr.rel (%p159) target = $region24
      $region23: #{tpu_custom_call.1} parent=5 // pred_region
        // Predicated region
        $region25: #{tpu_custom_call.1} parent=23 // pred_check
          %p162 = pneg %p50
        $region26: #{tpu_custom_call.1} parent=23 // pred_check_branch
          %164 = sbr.rel (%p162) target = $region28
        $region27: #{tpu_custom_call.1} parent=23 // pred_region
          %s165 = sand.u32 %s40, 1
          %s166 = scalar_lea.sflag [#allocation3], %s165
          %s167 = sand.u32 %s40, 1
          %s168 = smul.addr %s167, 4
          %s169 = scalar_lea.vmem [#allocation2], %s168
          %171 = vsyncadd %s166, 0
          %s172 = sadd.s32 %s24, %s23
          %s173 = smul.addr %s172, 4
          %s174 = scalar_lea.hbm %s0, %s173
          %s176 = sshll.u32 %s174, 4
          %s177 = int_to_ptr.hbm [resolvable:$true] %s176
          %s178 = sshll.u32 %s169, 4
          %s179 = int_to_ptr.vmem [resolvable:$true] %s178
          %181 = dma.hbm_to_vmem [thread:$0]  %s177, 64, %s179, %s166
        $region28: #{tpu_custom_call.1} parent=23 // pred_fallthru
          _
      $region24: #{tpu_custom_call.1} parent=5 // pred_fallthru
        _
      %p182 = scmp.le.s32.totalorder 1, %s16
      %p183 = scmp.lt.s32.totalorder %s16, 3
      %p184 = pnand %p182, %p183
      %p185 = pneg %p184
      // Predicated region
      $region29: #{tpu_custom_call.1} parent=5 // pred_check
        _
      $region30: #{tpu_custom_call.1} parent=5 // pred_check_branch
        %187 = sbr.rel (%p184) target = $region32
      $region31: #{tpu_custom_call.1} parent=5 // pred_region
        %s188 = ssub.s32 %s16, 1
        %s189 = sand.u32 %s43, 1
        %s190 = scalar_lea.sflag [#allocation3], %s189
        %s191 = sand.u32 %s43, 1
        %s192 = smul.addr %s191, 4
        %s193 = scalar_lea.vmem [#allocation2], %s192
        // Predicated region
        $region33: #{tpu_custom_call.1} parent=31 // pred_check
          %p194 = pneg %p56
        $region34: #{tpu_custom_call.1} parent=31 // pred_check_branch
          %196 = sbr.rel (%p194) target = $region36
        $region35: #{tpu_custom_call.1} parent=31 // pred_region
          %198 = dma.done %s190, 64
        $region36: #{tpu_custom_call.1} parent=31 // pred_fallthru
          _
        // Predicated region
        $region37: #{tpu_custom_call.1} parent=31 // pred_check
          %p199 = pneg %p77
        $region38: #{tpu_custom_call.1} parent=31 // pred_check_branch
          %201 = sbr.rel (%p199) target = $region40
        $region39: #{tpu_custom_call.1} parent=31 // pred_region
          %203 = dma.done [#allocation6], 256
        $region40: #{tpu_custom_call.1} parent=31 // pred_fallthru
          _
        %s204 = sand.u32 %s43, 1
        %s205 = scalar_lea.sflag [#allocation3], %s204
        %s206 = sand.u32 %s43, 1
        %s207 = smul.addr %s206, 4
        %s208 = scalar_lea.vmem [#allocation2], %s207
        %p209 = pneg %p56
        %p210 = pneg %p53
        %p211 = pneg %p77
        %p212 = pneg %p74
        %p213 = pneg %p98
        %p214 = pneg %p95
        %p215 = pneg %p126
        %p216 = pneg %p123
        %s217 = sand.u32 %s113, 1
        %s218 = scalar_lea.sflag [#allocation4], %s217
        %s219 = sand.u32 %s113, 1
        %s220 = smul.addr %s219, 4
        %s221 = scalar_lea.vmem [#allocation7], %s220
        %v223 = vld [vmem:[%s193] sm:$0xf]
        %v224 = vld [vmem:[#allocation5] sm:$0xf]
        %v225 = vld [vmem:[#allocation5 + $0x4] sm:$0xf]
        %v226 = vld [vmem:[#allocation5 + $0x8] sm:$0xf]
        %v227 = vld [vmem:[#allocation5 + $0xc] sm:$0xf]
        %v228 = vld [vmem:[%s2] sm:$0x1]
        %v230 = vperm.slane %v228, 0
        %v236 = vunpack.c.l.b16 %v224
        %v237 = vunpack.c.l.b16 %v225
        %v238 = vunpack.c.l.b16 %v226
        %v239 = vunpack.c.l.b16 %v227
        %v240 = vpack.c.b16 %v237, %v236
        %v241 = vpack.c.b16 %v239, %v238
        %vm244 = vcmask 261120
        %v246 = vsel %vm244, %v223, 0
        %248 = vmatpush.bf16.msra.mxu0 0
        %249 = vmatpush.bf16.msra.mxu0 0
        %250 = vmatpush.bf16.msra.mxu0 0
        %251 = vmatpush.bf16.msra.mxu0 0
        %252 = vmatpush.bf16.msra.mxu0 0
        %253 = vmatpush.bf16.msra.mxu0 0
        %254 = vmatpush.bf16.msra.mxu0 %v241
        %255 = vmatpush.bf16.msra.mxu0 %v240
        %256 = vmatmul.bf16.gmra.mxu0 %v246
        %v257 = vpop.f32.mrf.mxu0
        %v258 = vadd.f32 %v230, %v257
        %v259 = vpop.f32.mrf.mxu0
        %260 = vdwg.mxu0
        %v261 = vpack.c.bf16 %v258, %v258
        %vm262 = vcmask 519168
        %263 = vst.msk [vmem:[%s221] sm:$0xf] %vm262, %v261
        %s264 = sand.u32 %s113, 1
        %s265 = scalar_lea.sflag [#allocation4], %s264
        %s266 = sand.u32 %s113, 1
        %s267 = smul.addr %s266, 4
        %s268 = scalar_lea.vmem [#allocation7], %s267
        // Predicated region
        $region41: #{tpu_custom_call.1} parent=31 // pred_check
          %p269 = pneg %p123
        $region42: #{tpu_custom_call.1} parent=31 // pred_check_branch
          %271 = sbr.rel (%p269) target = $region44
        $region43: #{tpu_custom_call.1} parent=31 // pred_region
          %273 = vsyncadd %s265, 0
          %s274 = sadd.s32 %s26, %s25
          %s275 = smul.addr %s274, 4
          %s276 = scalar_lea.hbm %s3, %s275
          %s278 = sshll.u32 %s268, 4
          %s279 = int_to_ptr.vmem [resolvable:$true] %s278
          %s280 = sshll.u32 %s276, 4
          %s281 = int_to_ptr.hbm [resolvable:$true] %s280
          %283 = dma.vmem_to_hbm [thread:$0]  %s279, 64, %s281, %s265
        $region44: #{tpu_custom_call.1} parent=31 // pred_fallthru
          _
      $region32: #{tpu_custom_call.1} parent=5 // pred_fallthru
        _
      %p284 = scmp.le.s32.totalorder 2, %s16
      // Predicated region
      $region45: #{tpu_custom_call.1} parent=5 // pred_check
        %p285 = pneg %p284
      $region46: #{tpu_custom_call.1} parent=5 // pred_check_branch
        %287 = sbr.rel (%p285) target = $region48
      $region47: #{tpu_custom_call.1} parent=5 // pred_region
        %s288 = ssub.s32 %s16, 2
        // Predicated region
        $region49: #{tpu_custom_call.1} parent=47 // pred_check
          %p289 = pneg %p129
        $region50: #{tpu_custom_call.1} parent=47 // pred_check_branch
          %291 = sbr.rel (%p289) target = $region52
        $region51: #{tpu_custom_call.1} parent=47 // pred_region
          %s292 = sand.u32 %s114, 1
          %s293 = scalar_lea.sflag [#allocation4], %s292
          %s294 = sand.u32 %s114, 1
          %s295 = smul.addr %s294, 4
          %s296 = scalar_lea.vmem [#allocation7], %s295
          %298 = dma.done %s293, 64
        $region52: #{tpu_custom_call.1} parent=47 // pred_fallthru
          _
      $region48: #{tpu_custom_call.1} parent=5 // pred_fallthru
        _
    $region6: #{tpu_custom_call.1} parent=1 // loop_footer
      %s20 = sadd.s32 1, %s16
    $region7: #{tpu_custom_call.1} parent=1 // loop_footer_branch
      %15 = sbr.rel target = $region3
    $region8: #{tpu_custom_call.1} parent=1 // loop_exit
      _
    %299 = vsyncpa [#allocation3], 1
    %s300 = scalar_lea.sflag [#allocation3], 1
    %301 = vsyncpa %s300, 1
    %302 = vsyncpa [#allocation6], 1
    %303 = vsyncpa [#allocation4], 1
    %s304 = scalar_lea.sflag [#allocation4], 1
    %305 = vsyncpa %s304, 1

</llo_original>
